<compile_context>
chip_gen: v7x
topology: tpu7x:2x2x1
jax: 0.10.0
libtpu: 0.0.40
codegen_flags: <defaults>
</compile_context>

<pallas_src>
import jax
import jax.numpy as jnp
from jax.experimental import pallas as pl
from jax.experimental.pallas import tpu as pltpu


def _round_up(x, m):
    return (x + m - 1) // m * m


def aft_full_kernel(xq_ref, xkv_ref, bias_ref,
                    wq_ref, bq_ref, wkv_ref, bkv_ref, w2_ref, b2_ref,
                    out_ref):
    Bb, Tq, Dq = xq_ref.shape
    _, Tkv, Dkv = xkv_ref.shape
    Hp = wq_ref.shape[1]                      # lane-padded hidden dim (multiple of 128)

    # ---- input projections (bf16 MXU operands, f32 accumulation) -----------------
    xq = xq_ref[...].reshape(Bb * Tq, Dq).astype(jnp.bfloat16)
    xkv = xkv_ref[...].reshape(Bb * Tkv, Dkv).astype(jnp.bfloat16)

    # Fused K/V projection: one MXU matmul against [wk | wv].
    kv = jnp.dot(xkv, wkv_ref[...], preferred_element_type=jnp.float32) + bkv_ref[...]
    K = kv[:, :Hp]                            # (Bb*Tkv, Hp)  f32
    V = kv[:, Hp:]                            # (Bb*Tkv, Hp)  f32

    Q = jnp.dot(xq, wq_ref[...], preferred_element_type=jnp.float32) + bq_ref[...]

    # ---- numerically stable exponentials (shifts cancel in temp/denom ratio) -----
    k_shift = jnp.max(K, axis=0, keepdims=True)           # per-column max (XLU)
    exp_K = jnp.exp(K - k_shift)                          # (Bb*Tkv, Hp), values in (0,1]
    rhs = jnp.concatenate([exp_K * V, exp_K], axis=1)     # (Bb*Tkv, 2*Hp)
    rhs = rhs.reshape(Bb, Tkv, 2 * Hp).astype(jnp.bfloat16)

    w = bias_ref[...]                                     # (Bb, Tq, Tkv) f32
    w_shift = jnp.max(w, axis=-1, keepdims=True)
    exp_w = jnp.exp(w - w_shift).astype(jnp.bfloat16)     # (Bb, Tq, Tkv)

    # ---- temp and denom from ONE batched matmul ----------------------------------
    td = jnp.einsum("bqk,bkh->bqh", exp_w, rhs,
                    preferred_element_type=jnp.float32)   # (Bb, Tq, 2*Hp)
    temp = td[..., :Hp]
    denom = td[..., Hp:]
    weighted = temp * pl.reciprocal(denom, approx=True)

    gate = jax.nn.sigmoid(Q).reshape(Bb, Tq, Hp)          # EUP
    yt = (gate * weighted).astype(jnp.bfloat16).reshape(Bb * Tq, Hp)

    # ---- output projection (ffnn2) -------------------------------------------------
    out = jnp.dot(yt, w2_ref[...], preferred_element_type=jnp.float32) + b2_ref[...]
    out_ref[...] = out.reshape(Bb, Tq, Hp).astype(out_ref.dtype)


def _pick_batch_block(B, Tq, Tkv, Dq, Dkv, Hp, vmem_budget_bytes=12 << 20):
    """Largest divisor of B whose per-step VMEM footprint fits the budget.

    I/O blocks are double-buffered by the pipeline (bf16 activations, f32 bias/out);
    in-kernel f32 intermediates (K/V/exp_K/rhs/td/Q/...) are single-buffered.
    """
    io_per_b = 2 * (Tq * Dq + Tkv * Dkv) + 4 * Tq * Tkv + 4 * Tq * Hp
    tmp_per_b = 4 * (5 * Tkv * Hp + 4 * Tq * Hp + 2 * Tq * Tkv)
    cap = max(1, vmem_budget_bytes // (2 * io_per_b + tmp_per_b))
    bb = 1
    for d in range(1, B + 1):
        if B % d == 0 and d <= cap:
            bb = d
    return bb


def aft_full(x_q, x_kv, bias, params, *, batch_block=None):
    """params: dict with 'wq','bq','wk','bk','wv','bv','w2','b2'.
    Weight matrices are stored as (in_dim, out_dim) (already transposed vs. nn.Linear).
    Biases are stored as (1, out_dim)."""
    B, Tq, Dq = x_q.shape
    _, Tkv, Dkv = x_kv.shape
    H = params["wq"].shape[1]
    Hp = _round_up(H, 128)            # lane-dense hidden dim

    # Zero-pad the hidden dim (padded K columns give exp(0)=1, padded V/Q/w2 entries
    # are 0, so padded output columns are exactly 0 and are sliced off below) and
    # store matmul weights as bf16 (halves weight HBM->VMEM traffic).
    def pad_w(w):
        return jnp.pad(w, ((0, 0), (0, Hp - H))).astype(jnp.bfloat16)

    def pad_b(b):
        return jnp.pad(b, ((0, 0), (0, Hp - H))).astype(jnp.float32)

    wq = pad_w(params["wq"])
    bq = pad_b(params["bq"])
    wkv = jnp.concatenate([pad_w(params["wk"]), pad_w(params["wv"])], axis=1)
    bkv = jnp.concatenate([pad_b(params["bk"]), pad_b(params["bv"])], axis=1)
    w2 = jnp.pad(params["w2"], ((0, Hp - H), (0, Hp - H))).astype(jnp.bfloat16)
    b2 = pad_b(params["b2"])

    # Activations are only ever MXU operands (would be cast to bf16 in-kernel anyway),
    # so pre-cast them here and halve their HBM->VMEM DMA traffic.  The adaptation
    # bias stays f32: it feeds exp() before any MXU use.
    xq_b = x_q.astype(jnp.bfloat16)
    xkv_b = x_kv.astype(jnp.bfloat16)

    if batch_block is None:
        batch_block = _pick_batch_block(B, Tq, Tkv, Dq, Dkv, Hp)
    assert B % batch_block == 0, "batch_block must divide the batch size"
    Bb = batch_block

    batched = lambda t1, t2: pl.BlockSpec((Bb, t1, t2), lambda b: (b, 0, 0))
    const = lambda shp: pl.BlockSpec(shp, lambda b: (0,) * len(shp))

    out = pl.pallas_call(
        aft_full_kernel,
        out_shape=jax.ShapeDtypeStruct((B, Tq, Hp), x_q.dtype),
        grid_spec=pltpu.PrefetchScalarGridSpec(
            num_scalar_prefetch=0,
            grid=(B // Bb,),
            in_specs=[
                batched(Tq, Dq),          # x_q  (bf16)
                batched(Tkv, Dkv),        # x_kv (bf16)
                batched(Tq, Tkv),         # bias (adaptation bias w; bias_dim=None path)
                const((Dq, Hp)),          # wq   (bf16)
                const((1, Hp)),           # bq
                const((Dkv, 2 * Hp)),     # [wk | wv] fused (bf16)
                const((1, 2 * Hp)),       # [bk | bv]
                const((Hp, Hp)),          # w2 (ffnn2, bf16)
                const((1, Hp)),           # b2
            ],
            out_specs=pl.BlockSpec((Bb, Tq, Hp), lambda b: (b, 0, 0)),
        ),
        compiler_params=pltpu.CompilerParams(
            dimension_semantics=("parallel",),
            vmem_limit_bytes=32 * 1024 * 1024,
        ),
    )(xq_b, xkv_b, bias, wq, bq, wkv, bkv, w2, b2)

    return out[..., :H]


def init_params(key, dim_q, dim_kv, hid_dim):
    """Deterministic synthetic parameter init (PyTorch-style uniform fan-in scaling)."""
    ks = jax.random.split(key, 8)

    def lin(kw, kb, fan_in, fan_out):
        bound = 1.0 / jnp.sqrt(fan_in)
        w = jax.random.uniform(kw, (fan_in, fan_out), jnp.float32, -bound, bound)
        b = jax.random.uniform(kb, (1, fan_out), jnp.float32, -bound, bound)
        return w, b

    wq, bq = lin(ks[0], ks[1], dim_q, hid_dim)
    wk, bk = lin(ks[2], ks[3], dim_kv, hid_dim)
    wv, bv = lin(ks[4], ks[5], dim_kv, hid_dim)
    w2, b2 = lin(ks[6], ks[7], hid_dim, hid_dim)
    return {"wq": wq, "bq": bq, "wk": wk, "bk": bk,
            "wv": wv, "bv": bv, "w2": w2, "b2": b2}


def aft_full_ref(x_q, x_kv, bias, p):
    """Pure-JAX f32 reference of the PyTorch forward (bias_dim=None, mask=None)."""
    Q = x_q @ p["wq"] + p["bq"]
    K = x_kv @ p["wk"] + p["bk"]
    V = x_kv @ p["wv"] + p["bv"]
    exp_K = jnp.exp(K)
    exp_K_V = exp_K * V
    exp_w = jnp.exp(bias)
    temp = jnp.einsum("bqk,bkh->bqh", exp_w, exp_K_V)
    denom = jnp.einsum("bqk,bkh->bqh", exp_w, exp_K)
    Yt = jax.nn.sigmoid(Q) * (temp / denom)
    return Yt @ p["w2"] + p["b2"]


if __name__ == "__main__":
    # Small shapes consistent with the module: batch=2, Tq=8, Tkv=8,
    # dim_q=16, dim_kv=16, hid_dim=32, bias_dim=None, mask=None.
    B, Tq, Tkv = 2, 8, 8
    dim_q, dim_kv, hid_dim = 16, 16, 32

    key = jax.random.PRNGKey(0)
    k_xq, k_xkv, k_bias, k_par = jax.random.split(key, 4)

    x_q = jax.random.normal(k_xq, (B, Tq, dim_q), jnp.float32)
    x_kv = jax.random.normal(k_xkv, (B, Tkv, dim_kv), jnp.float32)
    bias = 0.1 * jax.random.normal(k_bias, (B, Tq, Tkv), jnp.float32)

    params = init_params(k_par, dim_q, dim_kv, hid_dim)

    out = jax.block_until_ready(aft_full(x_q, x_kv, bias, params))
    ref = aft_full_ref(x_q, x_kv, bias, params)

    assert out.shape == (B, Tq, hid_dim)
    # bf16 MXU operands + approx reciprocal in the kernel -> loose tolerance vs f32 ref.
    assert jnp.allclose(out, ref, atol=1e-1, rtol=1e-1)

    print("KERNEL_OK")
</pallas_src>

<mosaic_0001>
module attributes {stable_mosaic.version = 11 : i64} {
  func.func @aft_full_kernel(%arg0: i32, %arg1: memref<2x8x16xbf16, #tpu.memory_space<vmem>>, %arg2: memref<2x8x16xbf16, #tpu.memory_space<vmem>>, %arg3: memref<2x8x8xf32, #tpu.memory_space<vmem>>, %arg4: memref<16x128xbf16, #tpu.memory_space<vmem>>, %arg5: memref<1x128xf32, #tpu.memory_space<vmem>>, %arg6: memref<16x256xbf16, #tpu.memory_space<vmem>>, %arg7: memref<1x256xf32, #tpu.memory_space<vmem>>, %arg8: memref<128x128xbf16, #tpu.memory_space<vmem>>, %arg9: memref<1x128xf32, #tpu.memory_space<vmem>>, %arg10: memref<2x8x128xf32, #tpu.memory_space<vmem>>) attributes {dimension_semantics = [#tpu.dimension_semantics<parallel>], iteration_bounds = array<i64: 1>, scalar_prefetch = 0 : i64, scratch_operands = 0 : i64, tpu.core_type = #tpu.core_type<tc>, window_params = [{transform_indices = @transform_0, window_bounds = array<i64: 2, 8, 16>}, {transform_indices = @transform_1, window_bounds = array<i64: 2, 8, 16>}, {transform_indices = @transform_2, window_bounds = array<i64: 2, 8, 8>}, {pipeline_mode = #tpu.pipeline_mode<synchronous>, transform_indices = @transform_3, window_bounds = array<i64: 16, 128>}, {pipeline_mode = #tpu.pipeline_mode<synchronous>, transform_indices = @transform_4, window_bounds = array<i64: 1, 128>}, {pipeline_mode = #tpu.pipeline_mode<synchronous>, transform_indices = @transform_5, window_bounds = array<i64: 16, 256>}, {pipeline_mode = #tpu.pipeline_mode<synchronous>, transform_indices = @transform_6, window_bounds = array<i64: 1, 256>}, {pipeline_mode = #tpu.pipeline_mode<synchronous>, transform_indices = @transform_7, window_bounds = array<i64: 128, 128>}, {pipeline_mode = #tpu.pipeline_mode<synchronous>, transform_indices = @transform_8, window_bounds = array<i64: 1, 128>}, {transform_indices = @transform_9, window_bounds = array<i64: 2, 8, 128>}]} {
    %c0 = arith.constant 0 : index
    %c0_0 = arith.constant 0 : index
    %c0_1 = arith.constant 0 : index
    %0 = vector.load %arg1[%c0, %c0_0, %c0_1] : memref<2x8x16xbf16, #tpu.memory_space<vmem>>, vector<2x8x16xbf16>
    %1 = vector.shape_cast %0 : vector<2x8x16xbf16> to vector<16x16xbf16>
    %c0_2 = arith.constant 0 : index
    %c0_3 = arith.constant 0 : index
    %c0_4 = arith.constant 0 : index
    %2 = vector.load %arg2[%c0_2, %c0_3, %c0_4] : memref<2x8x16xbf16, #tpu.memory_space<vmem>>, vector<2x8x16xbf16>
    %3 = vector.shape_cast %2 : vector<2x8x16xbf16> to vector<16x16xbf16>
    %c0_5 = arith.constant 0 : index
    %c0_6 = arith.constant 0 : index
    %4 = vector.load %arg6[%c0_5, %c0_6] : memref<16x256xbf16, #tpu.memory_space<vmem>>, vector<16x256xbf16>
    %cst = arith.constant dense<0.000000e+00> : vector<16x256xf32>
    %5 = tpu.matmul %3, %4, %cst {dimension_numbers = #tpu.dot_dimension_numbers<[1], [0], [0], [1], [0, 0, 1, 1], [], []>} : vector<16x16xbf16>, vector<16x256xbf16>, vector<16x256xf32> -> vector<16x256xf32>
    %c0_7 = arith.constant 0 : index
    %c0_8 = arith.constant 0 : index
    %6 = vector.load %arg7[%c0_7, %c0_8] : memref<1x256xf32, #tpu.memory_space<vmem>>, vector<1x256xf32>
    %7 = vector.broadcast %6 : vector<1x256xf32> to vector<16x256xf32>
    %8 = arith.addf %5, %7 : vector<16x256xf32>
    %9 = vector.extract_strided_slice %8 {offsets = [0, 0], sizes = [16, 128], strides = [1, 1]} : vector<16x256xf32> to vector<16x128xf32>
    %10 = vector.extract_strided_slice %8 {offsets = [0, 128], sizes = [16, 128], strides = [1, 1]} : vector<16x256xf32> to vector<16x128xf32>
    %c0_9 = arith.constant 0 : index
    %c0_10 = arith.constant 0 : index
    %11 = vector.load %arg4[%c0_9, %c0_10] : memref<16x128xbf16, #tpu.memory_space<vmem>>, vector<16x128xbf16>
    %cst_11 = arith.constant dense<0.000000e+00> : vector<16x128xf32>
    %12 = tpu.matmul %1, %11, %cst_11 {dimension_numbers = #tpu.dot_dimension_numbers<[1], [0], [0], [1], [0, 0, 1, 1], [], []>} : vector<16x16xbf16>, vector<16x128xbf16>, vector<16x128xf32> -> vector<16x128xf32>
    %c0_12 = arith.constant 0 : index
    %c0_13 = arith.constant 0 : index
    %13 = vector.load %arg5[%c0_12, %c0_13] : memref<1x128xf32, #tpu.memory_space<vmem>>, vector<1x128xf32>
    %14 = vector.broadcast %13 : vector<1x128xf32> to vector<16x128xf32>
    %15 = arith.addf %12, %14 : vector<16x128xf32>
    %cst_14 = arith.constant dense<0xFF800000> : vector<128xf32>
    %16 = vector.multi_reduction <maximumf>, %9, %cst_14 [0] : vector<16x128xf32> to vector<128xf32>
    %17 = vector.shape_cast %16 : vector<128xf32> to vector<1x128xf32>
    %18 = vector.broadcast %17 : vector<1x128xf32> to vector<16x128xf32>
    %19 = arith.subf %9, %18 : vector<16x128xf32>
    %20 = math.exp %19 : vector<16x128xf32>
    %21 = arith.mulf %20, %10 : vector<16x128xf32>
    %22 = tpu.concatenate %21, %20 in 1 : vector<16x128xf32>, vector<16x128xf32> -> vector<16x256xf32>
    %23 = vector.shape_cast %22 : vector<16x256xf32> to vector<2x8x256xf32>
    %24 = arith.truncf %23 : vector<2x8x256xf32> to vector<2x8x256xbf16>
    %c0_15 = arith.constant 0 : index
    %c0_16 = arith.constant 0 : index
    %c0_17 = arith.constant 0 : index
    %25 = vector.load %arg3[%c0_15, %c0_16, %c0_17] : memref<2x8x8xf32, #tpu.memory_space<vmem>>, vector<2x8x8xf32>
    %cst_18 = arith.constant dense<0xFF800000> : vector<2x8xf32>
    %26 = vector.multi_reduction <maximumf>, %25, %cst_18 [2] : vector<2x8x8xf32> to vector<2x8xf32>
    %27 = vector.shape_cast %26 : vector<2x8xf32> to vector<2x8x1xf32>
    %28 = vector.broadcast %27 : vector<2x8x1xf32> to vector<2x8x8xf32>
    %29 = arith.subf %25, %28 : vector<2x8x8xf32>
    %30 = math.exp %29 : vector<2x8x8xf32>
    %31 = arith.truncf %30 : vector<2x8x8xf32> to vector<2x8x8xbf16>
    "tpu.trace_start"() <{level = 10 : i32, message = "bqk,bkh->bqh"}> : () -> ()
    %cst_19 = arith.constant dense<0.000000e+00> : vector<2x8x256xf32>
    %32 = tpu.matmul %31, %24, %cst_19 {dimension_numbers = #tpu.dot_dimension_numbers<[2], [1], [1], [2], [0, 0, 0, 1, 1, 2], [0], [0]>} : vector<2x8x8xbf16>, vector<2x8x256xbf16>, vector<2x8x256xf32> -> vector<2x8x256xf32>
    "tpu.trace_stop"() : () -> ()
    %33 = vector.extract_strided_slice %32 {offsets = [0, 0, 0], sizes = [2, 8, 128], strides = [1, 1, 1]} : vector<2x8x256xf32> to vector<2x8x128xf32>
    %34 = vector.extract_strided_slice %32 {offsets = [0, 0, 128], sizes = [2, 8, 128], strides = [1, 1, 1]} : vector<2x8x256xf32> to vector<2x8x128xf32>
    %35 = tpu.reciprocal %34 {approx = true} : vector<2x8x128xf32> -> vector<2x8x128xf32>
    %36 = arith.mulf %33, %35 : vector<2x8x128xf32>
    %37 = arith.negf %15 : vector<16x128xf32>
    %38 = math.exp %37 : vector<16x128xf32>
    %cst_20 = arith.constant 1.000000e+00 : f32
    %39 = vector.broadcast %cst_20 : f32 to vector<16x128xf32>
    %40 = arith.addf %39, %38 : vector<16x128xf32>
    %41 = arith.divf %39, %40 : vector<16x128xf32>
    %42 = vector.shape_cast %41 : vector<16x128xf32> to vector<2x8x128xf32>
    %43 = arith.mulf %42, %36 : vector<2x8x128xf32>
    %44 = arith.truncf %43 : vector<2x8x128xf32> to vector<2x8x128xbf16>
    %45 = vector.shape_cast %44 : vector<2x8x128xbf16> to vector<16x128xbf16>
    %c0_21 = arith.constant 0 : index
    %c0_22 = arith.constant 0 : index
    %46 = vector.load %arg8[%c0_21, %c0_22] : memref<128x128xbf16, #tpu.memory_space<vmem>>, vector<128x128xbf16>
    %cst_23 = arith.constant dense<0.000000e+00> : vector<16x128xf32>
    %47 = tpu.matmul %45, %46, %cst_23 {dimension_numbers = #tpu.dot_dimension_numbers<[1], [0], [0], [1], [0, 0, 1, 1], [], []>} : vector<16x128xbf16>, vector<128x128xbf16>, vector<16x128xf32> -> vector<16x128xf32>
    %c0_24 = arith.constant 0 : index
    %c0_25 = arith.constant 0 : index
    %48 = vector.load %arg9[%c0_24, %c0_25] : memref<1x128xf32, #tpu.memory_space<vmem>>, vector<1x128xf32>
    %49 = vector.broadcast %48 : vector<1x128xf32> to vector<16x128xf32>
    %50 = arith.addf %47, %49 : vector<16x128xf32>
    %51 = vector.shape_cast %50 : vector<16x128xf32> to vector<2x8x128xf32>
    %c0_26 = arith.constant 0 : index
    %c0_27 = arith.constant 0 : index
    %c0_28 = arith.constant 0 : index
    %52 = vector.load %arg10[%c0_26, %c0_27, %c0_28] : memref<2x8x128xf32, #tpu.memory_space<vmem>>, vector<2x8x128xf32>
    tpu.vector_store %arg10[%c0_26, %c0_27, %c0_28], %51 {strides = array<i32>} : memref<2x8x128xf32, #tpu.memory_space<vmem>>, vector<2x8x128xf32>,
    return
  }
  func.func @transform_0(%arg0: i32) -> (i32, i32, i32) {
    %c0_i32 = arith.constant 0 : i32
    %c0_i32_0 = arith.constant 0 : i32
    %c0_i32_1 = arith.constant 0 : i32
    return %arg0, %c0_i32, %c0_i32_0 : i32, i32, i32
  }
  func.func @transform_1(%arg0: i32) -> (i32, i32, i32) {
    %c0_i32 = arith.constant 0 : i32
    %c0_i32_0 = arith.constant 0 : i32
    %c0_i32_1 = arith.constant 0 : i32
    return %arg0, %c0_i32, %c0_i32_0 : i32, i32, i32
  }
  func.func @transform_2(%arg0: i32) -> (i32, i32, i32) {
    %c0_i32 = arith.constant 0 : i32
    %c0_i32_0 = arith.constant 0 : i32
    %c0_i32_1 = arith.constant 0 : i32
    return %arg0, %c0_i32, %c0_i32_0 : i32, i32, i32
  }
  func.func @transform_3(%arg0: i32) -> (i32, i32) {
    %c0_i32 = arith.constant 0 : i32
    %c0_i32_0 = arith.constant 0 : i32
    %c0_i32_1 = arith.constant 0 : i32
    return %c0_i32, %c0_i32_0 : i32, i32
  }
  func.func @transform_4(%arg0: i32) -> (i32, i32) {
    %c0_i32 = arith.constant 0 : i32
    %c0_i32_0 = arith.constant 0 : i32
    %c0_i32_1 = arith.constant 0 : i32
    return %c0_i32, %c0_i32_0 : i32, i32
  }
  func.func @transform_5(%arg0: i32) -> (i32, i32) {
    %c0_i32 = arith.constant 0 : i32
    %c0_i32_0 = arith.constant 0 : i32
    %c0_i32_1 = arith.constant 0 : i32
    return %c0_i32, %c0_i32_0 : i32, i32
  }
  func.func @transform_6(%arg0: i32) -> (i32, i32) {
    %c0_i32 = arith.constant 0 : i32
    %c0_i32_0 = arith.constant 0 : i32
    %c0_i32_1 = arith.constant 0 : i32
    return %c0_i32, %c0_i32_0 : i32, i32
  }
  func.func @transform_7(%arg0: i32) -> (i32, i32) {
    %c0_i32 = arith.constant 0 : i32
    %c0_i32_0 = arith.constant 0 : i32
    %c0_i32_1 = arith.constant 0 : i32
    return %c0_i32, %c0_i32_0 : i32, i32
  }
  func.func @transform_8(%arg0: i32) -> (i32, i32) {
    %c0_i32 = arith.constant 0 : i32
    %c0_i32_0 = arith.constant 0 : i32
    %c0_i32_1 = arith.constant 0 : i32
    return %c0_i32, %c0_i32_0 : i32, i32
  }
  func.func @transform_9(%arg0: i32) -> (i32, i32, i32) {
    %c0_i32 = arith.constant 0 : i32
    %c0_i32_0 = arith.constant 0 : i32
    %c0_i32_1 = arith.constant 0 : i32
    return %arg0, %c0_i32, %c0_i32_0 : i32, i32, i32
  }
}

</mosaic_0001>

<llo_original>
// kernel: tpu_custom_call.1
$region0: #{tpu_custom_call.1}
  #allocation0 [shape = 'u32[]', space=smem, size = 0x4, offset = 0x4, fixed_abs, tag = 'smem constant byte address 0x4 - core index']
  #allocation1 [shape = 'u32[144,128]{1,0:T(1,128)}', space=vmem, size = 0x12000, scoped, tag = 'internal scratch']
  %s0 = inlined_call_operand.hbm [shape: bf16[2,8,16], index: 0, kind: input, shape index: {}]
  %s1 = inlined_call_operand.hbm [shape: bf16[2,8,16], index: 1, kind: input, shape index: {}]
  %s2 = inlined_call_operand.hbm [shape: f32[2,8,8], index: 2, kind: input, shape index: {}]
  %s3 = inlined_call_operand.hbm [shape: bf16[16,128], index: 3, kind: input, shape index: {}]
  %s4 = inlined_call_operand.hbm [shape: f32[1,128], index: 4, kind: input, shape index: {}]
  %s5 = inlined_call_operand.vmem [shape: bf16[16,256], index: 5, kind: input, shape index: {}]
  %s6 = inlined_call_operand.vmem [shape: f32[1,256], index: 6, kind: input, shape index: {}]
  %s7 = inlined_call_operand.hbm [shape: bf16[128,128], index: 7, kind: input, shape index: {}]
  %s8 = inlined_call_operand.vmem [shape: f32[1,128], index: 8, kind: input, shape index: {}]
  %s9 = inlined_call_operand.hbm [shape: f32[2,8,128], index: 9, kind: output, shape index: {}]
  %s10 = sld [smem:[#allocation0]]
  $region70: #{tpu_custom_call.1} parent=0
    _
  %s12 = ssub.s32 1, %s10
  %s13 = scalar_select 0, %s12, %s10
  $region1: #{tpu_custom_call.1} parent=0
    #allocation2 [shape = 'u8[4096]{0}', space=vmem, size = 0x1000, scoped, tag = 'input window, operand 0, single buffered']
    #allocation3 [shape = 's32[1]{0}', space=sflag, size = 0x4, scoped, tag = 'scoped memory for tpu_custom_call.1']
    #allocation4 [shape = 's32[1]{0}', space=sflag, size = 0x4, scoped, tag = 'scoped memory for tpu_custom_call.1']
    #allocation5 [shape = 'u8[4096]{0}', space=vmem, size = 0x1000, scoped, tag = 'input window, operand 1, single buffered']
    #allocation6 [shape = 's32[1]{0}', space=sflag, size = 0x4, scoped, tag = 'scoped memory for tpu_custom_call.1']
    #allocation7 [shape = 'u8[8192]{0}', space=vmem, size = 0x2000, scoped, tag = 'input window, operand 2, single buffered']
    #allocation8 [shape = 'u8[4096]{0}', space=vmem, size = 0x1000, scoped, tag = 'input window, operand 3, single buffered']
    #allocation9 [shape = 's32[1]{0}', space=sflag, size = 0x4, scoped, tag = 'scoped memory for tpu_custom_call.1']
    #allocation10 [shape = 'u8[512]{0}', space=vmem, size = 0x400, scoped, tag = 'input window, operand 4, single buffered']
    #allocation11 [shape = 'u8[32768]{0}', space=vmem, size = 0x8000, scoped, tag = 'input window, operand 7, single buffered']
    #allocation12 [shape = 's32[1]{0}', space=sflag, size = 0x4, scoped, tag = 'scoped memory for tpu_custom_call.1']
    #allocation13 [shape = 'u8[8192]{0}', space=vmem, size = 0x2000, scoped, tag = 'output window, operand 0, single buffered']
    %14 = vsyncpa [#allocation3], 0
    %15 = vsyncpa [#allocation6], 0
    %16 = vsyncpa [#allocation9], 0
    %17 = vsyncpa [#allocation12], 0
    %18 = vsyncpa [#allocation4], 0
    // Predicated region
    $region2: #{tpu_custom_call.1} parent=1 // pred_check
      _
    $region3: #{tpu_custom_call.1} parent=1 // pred_check_branch
      %20 = sbr.rel (0) target = $region5
    $region4: #{tpu_custom_call.1} parent=1 // pred_region
      %s22 = ssub.s32 128, 128
      %23 = vsyncadd [#allocation3], %s22
      %s24 = sshll.u32 [#allocation2], 4
      %s25 = int_to_ptr.vmem [resolvable:$true] %s24
      %30 = dma.hbm_to_vmem [thread:$0]  %s0, 128, %s25, [#allocation3], 64, 64, 4
    $region5: #{tpu_custom_call.1} parent=1 // pred_fallthru
      _
    // Predicated region
    $region6: #{tpu_custom_call.1} parent=1 // pred_check
      _
    $region7: #{tpu_custom_call.1} parent=1 // pred_check_branch
      %32 = sbr.rel (0) target = $region9
    $region8: #{tpu_custom_call.1} parent=1 // pred_region
      %s34 = ssub.s32 128, 128
      %35 = vsyncadd [#allocation6], %s34
      %s36 = sshll.u32 [#allocation5], 4
      %s37 = int_to_ptr.vmem [resolvable:$true] %s36
      %42 = dma.hbm_to_vmem [thread:$0]  %s1, 128, %s37, [#allocation6], 64, 64, 4
    $region9: #{tpu_custom_call.1} parent=1 // pred_fallthru
      _
    // Predicated region
    $region10: #{tpu_custom_call.1} parent=1 // pred_check
      _
    $region11: #{tpu_custom_call.1} parent=1 // pred_check_branch
      %44 = sbr.rel (0) target = $region13
    $region12: #{tpu_custom_call.1} parent=1 // pred_region
      %s46 = ssub.s32 256, 256
      %47 = vsyncadd [#allocation6], %s46
      %s48 = sshll.u32 [#allocation7], 4
      %s49 = int_to_ptr.vmem [resolvable:$true] %s48
      %54 = dma.hbm_to_vmem [thread:$0]  %s2, 256, %s49, [#allocation6], 128, 128, 8
    $region13: #{tpu_custom_call.1} parent=1 // pred_fallthru
      _
    // Predicated region
    $region14: #{tpu_custom_call.1} parent=1 // pred_check
      _
    $region15: #{tpu_custom_call.1} parent=1 // pred_check_branch
      %56 = sbr.rel (0) target = $region17
    $region16: #{tpu_custom_call.1} parent=1 // pred_region
      %s58 = ssub.s32 128, 128
      %59 = vsyncadd [#allocation9], %s58
      %s60 = sshll.u32 [#allocation8], 4
      %s61 = int_to_ptr.vmem [resolvable:$true] %s60
      %66 = dma.hbm_to_vmem [thread:$0]  %s3, 128, %s61, [#allocation9], 64, 64, 4
    $region17: #{tpu_custom_call.1} parent=1 // pred_fallthru
      _
    // Predicated region
    $region18: #{tpu_custom_call.1} parent=1 // pred_check
      _
    $region19: #{tpu_custom_call.1} parent=1 // pred_check_branch
      %68 = sbr.rel (0) target = $region21
    $region20: #{tpu_custom_call.1} parent=1 // pred_region
      %s70 = ssub.s32 16, 16
      %71 = vsyncadd [#allocation9], %s70
      %s73 = sshll.u32 [#allocation10], 4
      %s74 = int_to_ptr.vmem [resolvable:$true] %s73
      %76 = dma.hbm_to_vmem [thread:$0]  %s4, 16, %s74, [#allocation9]
    $region21: #{tpu_custom_call.1} parent=1 // pred_fallthru
      _
    // Predicated region
    $region22: #{tpu_custom_call.1} parent=1 // pred_check
      _
    $region23: #{tpu_custom_call.1} parent=1 // pred_check_branch
      %78 = sbr.rel (0) target = $region25
    $region24: #{tpu_custom_call.1} parent=1 // pred_region
      _
    $region25: #{tpu_custom_call.1} parent=1 // pred_fallthru
      _
    // Predicated region
    $region26: #{tpu_custom_call.1} parent=1 // pred_check
      _
    $region27: #{tpu_custom_call.1} parent=1 // pred_check_branch
      %80 = sbr.rel (0) target = $region29
    $region28: #{tpu_custom_call.1} parent=1 // pred_region
      _
    $region29: #{tpu_custom_call.1} parent=1 // pred_fallthru
      _
    // Predicated region
    $region30: #{tpu_custom_call.1} parent=1 // pred_check
      _
    $region31: #{tpu_custom_call.1} parent=1 // pred_check_branch
      %82 = sbr.rel (0) target = $region33
    $region32: #{tpu_custom_call.1} parent=1 // pred_region
      %s84 = ssub.s32 1024, 1024
      %85 = vsyncadd [#allocation12], %s84
      %s86 = sshll.u32 [#allocation11], 4
      %s87 = int_to_ptr.vmem [resolvable:$true] %s86
      %92 = dma.hbm_to_vmem [thread:$0]  %s7, 1024, %s87, [#allocation12], 64, 64, 4
    $region33: #{tpu_custom_call.1} parent=1 // pred_fallthru
      _
    // Predicated region
    $region34: #{tpu_custom_call.1} parent=1 // pred_check
      _
    $region35: #{tpu_custom_call.1} parent=1 // pred_check_branch
      %94 = sbr.rel (0) target = $region37
    $region36: #{tpu_custom_call.1} parent=1 // pred_region
      _
    $region37: #{tpu_custom_call.1} parent=1 // pred_fallthru
      _
    // Predicated region
    $region38: #{tpu_custom_call.1} parent=1 // pred_check
      _
    $region39: #{tpu_custom_call.1} parent=1 // pred_check_branch
      %96 = sbr.rel (0) target = $region41
    $region40: #{tpu_custom_call.1} parent=1 // pred_region
      %97 = dma.done [#allocation3], 128
    $region41: #{tpu_custom_call.1} parent=1 // pred_fallthru
      _
    // Predicated region
    $region42: #{tpu_custom_call.1} parent=1 // pred_check
      _
    $region43: #{tpu_custom_call.1} parent=1 // pred_check_branch
      %99 = sbr.rel (0) target = $region45
    $region44: #{tpu_custom_call.1} parent=1 // pred_region
      %100 = dma.done [#allocation6], 128
    $region45: #{tpu_custom_call.1} parent=1 // pred_fallthru
      _
    // Predicated region
    $region46: #{tpu_custom_call.1} parent=1 // pred_check
      _
    $region47: #{tpu_custom_call.1} parent=1 // pred_check_branch
      %102 = sbr.rel (0) target = $region49
    $region48: #{tpu_custom_call.1} parent=1 // pred_region
      %103 = dma.done [#allocation6], 256
    $region49: #{tpu_custom_call.1} parent=1 // pred_fallthru
      _
    // Predicated region
    $region50: #{tpu_custom_call.1} parent=1 // pred_check
      _
    $region51: #{tpu_custom_call.1} parent=1 // pred_check_branch
      %105 = sbr.rel (0) target = $region53
    $region52: #{tpu_custom_call.1} parent=1 // pred_region
      %106 = dma.done [#allocation9], 128
    $region53: #{tpu_custom_call.1} parent=1 // pred_fallthru
      _
    // Predicated region
    $region54: #{tpu_custom_call.1} parent=1 // pred_check
      _
    $region55: #{tpu_custom_call.1} parent=1 // pred_check_branch
      %108 = sbr.rel (0) target = $region57
    $region56: #{tpu_custom_call.1} parent=1 // pred_region
      %109 = dma.done [#allocation9], 16
    $region57: #{tpu_custom_call.1} parent=1 // pred_fallthru
      _
    // Predicated region
    $region58: #{tpu_custom_call.1} parent=1 // pred_check
      _
    $region59: #{tpu_custom_call.1} parent=1 // pred_check_branch
      %111 = sbr.rel (0) target = $region61
    $region60: #{tpu_custom_call.1} parent=1 // pred_region
      %112 = dma.done [#allocation12], 1024
    $region61: #{tpu_custom_call.1} parent=1 // pred_fallthru
      _
    %v114 = vld [vmem:[#allocation2] sm:$0xf]
    %v115 = vld [vmem:[#allocation2 + $0x4] sm:$0xf]
    %v116 = vld [vmem:[#allocation5] sm:$0xf]
    %v117 = vld [vmem:[#allocation5 + $0x4] sm:$0xf]
    %v118 = vld [vmem:[%s5] sm:$0xff]
    %v119 = vld [vmem:[%s5 + $0x8] sm:$0xff]
    %v120 = vld [vmem:[%s6] sm:$0x3]
    %v122 = vlaneseq
    %v123 = vshrl.u32 %v122, 7
    %v124 = vsub.s32 0, %v123
    %v125 = vrot.slane %v120, %v124
    %v126 = vlaneseq
    %v127 = vshrl.u32 %v126, 7
    %v128 = vsub.s32 1, %v127
    %v129 = vrot.slane %v120, %v128
    %v134 = vunpack.c.l.b16 %v116
    %v135 = vunpack.c.l.b16 %v117
    %v136 = vpack.c.b16 %v135, %v134
    %v139 = vunpack.c.l.b16 %v118
    %v140 = vunpack.c.h.b16 %v118
    %v141 = vunpack.c.l.b16 %v119
    %v142 = vunpack.c.h.b16 %v119
    %v143 = vpack.c.b16 %v141, %v139
    %v144 = vpack.c.b16 %v142, %v140
    %vm147 = vcmask 130048
    %v149 = vsel %vm147, %v136, 0
    %151 = vmatprep.subr.bf16.mxu0 %v144
    %152 = vmatpush1.bf16.msra.mxu0 %v143
    %153 = vmatprep.subr.bf16.mxu0 0
    %154 = vmatpush1.bf16.msra.mxu0 0
    %155 = vmatprep.subr.bf16.mxu0 0
    %156 = vmatpush1.bf16.msra.mxu0 0
    %157 = vmatprep.subr.bf16.mxu0 0
    %158 = vmatpush1.bf16.msra.mxu0 0
    %159 = vmatprep.subr.bf16.mxu0 0
    %160 = vmatpush1.bf16.msra.mxu0 0
    %161 = vmatprep.subr.bf16.mxu0 0
    %162 = vmatpush1.bf16.msra.mxu0 0
    %163 = vmatprep.subr.bf16.mxu0 0
    %164 = vmatpush1.bf16.msra.mxu0 0
    %165 = vmatprep.subr.bf16.mxu0 0
    %166 = vmatpush1.bf16.msra.mxu0 0
    %167 = vmatprep.subr.bf16.mxu0 0
    %168 = vmatpush1.bf16.msra.mxu0 0
    %169 = vmatprep.subr.bf16.mxu0 0
    %170 = vmatpush1.bf16.msra.mxu0 0
    %171 = vmatprep.subr.bf16.mxu0 0
    %172 = vmatpush1.bf16.msra.mxu0 0
    %173 = vmatprep.subr.bf16.mxu0 0
    %174 = vmatpush1.bf16.msra.mxu0 0
    %175 = vmatprep.subr.bf16.mxu0 0
    %176 = vmatpush1.bf16.msra.mxu0 0
    %177 = vmatprep.subr.bf16.mxu0 0
    %178 = vmatpush1.bf16.msra.mxu0 0
    %179 = vmatprep.subr.bf16.mxu0 0
    %180 = vmatpush1.bf16.msra.mxu0 0
    %181 = vmatprep.subr.bf16.mxu0 0
    %182 = vmatpush1.bf16.msra.mxu0 0
    %183 = vmatprep.mubr.bf16.mxu0 0
    %184 = vmatmul.mubr.bf16.gmra.mrb[0].mxu0 %v149
    %v185 = vpop.f32.mrb[0].mxu0
    %v186 = vadd.f32 %v125, %v185
    %v187 = vpop.f32.mrb[0].mxu0
    %v188 = vadd.f32 %v129, %v187
    %v189 = vpop.f32.mrb[0].mxu0
    %v190 = vadd.f32 %v125, %v189
    %v191 = vpop.f32.mrb[0].mxu0
    %v192 = vadd.f32 %v129, %v191
    %193 = vdwg.mxu0
    %v194 = vld [vmem:[#allocation8] sm:$0xf]
    %v195 = vld [vmem:[#allocation8 + $0x4] sm:$0xf]
    %v196 = vld [vmem:[#allocation10] sm:$0x1]
    %v198 = vlaneseq
    %v199 = vshrl.u32 %v198, 7
    %v200 = vsub.s32 0, %v199
    %v201 = vrot.slane %v196, %v200
    %v205 = vunpack.c.l.b16 %v114
    %v206 = vunpack.c.l.b16 %v115
    %v207 = vpack.c.b16 %v206, %v205
    %v210 = vunpack.c.l.b16 %v194
    %v211 = vunpack.c.l.b16 %v195
    %v212 = vpack.c.b16 %v211, %v210
    %v215 = vsel %vm147, %v207, 0
    %217 = vmatprep.subr.bf16.mxu0 0
    %218 = vmatpush1.bf16.msra.mxu0 %v212
    %219 = vmatprep.subr.bf16.mxu0 0
    %220 = vmatpush1.bf16.msra.mxu0 0
    %221 = vmatprep.subr.bf16.mxu0 0
    %222 = vmatpush1.bf16.msra.mxu0 0
    %223 = vmatprep.subr.bf16.mxu0 0
    %224 = vmatpush1.bf16.msra.mxu0 0
    %225 = vmatprep.subr.bf16.mxu0 0
    %226 = vmatpush1.bf16.msra.mxu0 0
    %227 = vmatprep.subr.bf16.mxu0 0
    %228 = vmatpush1.bf16.msra.mxu0 0
    %229 = vmatprep.subr.bf16.mxu0 0
    %230 = vmatpush1.bf16.msra.mxu0 0
    %231 = vmatprep.subr.bf16.mxu0 0
    %232 = vmatpush1.bf16.msra.mxu0 0
    %233 = vmatprep.subr.bf16.mxu0 0
    %234 = vmatpush1.bf16.msra.mxu0 0
    %235 = vmatprep.subr.bf16.mxu0 0
    %236 = vmatpush1.bf16.msra.mxu0 0
    %237 = vmatprep.subr.bf16.mxu0 0
    %238 = vmatpush1.bf16.msra.mxu0 0
    %239 = vmatprep.subr.bf16.mxu0 0
    %240 = vmatpush1.bf16.msra.mxu0 0
    %241 = vmatprep.subr.bf16.mxu0 0
    %242 = vmatpush1.bf16.msra.mxu0 0
    %243 = vmatprep.subr.bf16.mxu0 0
    %244 = vmatpush1.bf16.msra.mxu0 0
    %245 = vmatprep.subr.bf16.mxu0 0
    %246 = vmatpush1.bf16.msra.mxu0 0
    %247 = vmatprep.subr.bf16.mxu0 0
    %248 = vmatpush1.bf16.msra.mxu0 0
    %249 = vmatprep.mubr.bf16.mxu0 0
    %250 = vmatmul.mubr.bf16.gmra.mrb[0].mxu0 %v215
    %v251 = vpop.f32.mrb[0].mxu0
    %v252 = vadd.f32 %v201, %v251
    %v253 = vpop.f32.mrb[0].mxu0
    %v254 = vpop.f32.mrb[0].mxu0
    %v255 = vadd.f32 %v201, %v254
    %v256 = vpop.f32.mrb[0].mxu0
    %257 = vdwg.mxu0
    %v258 = vmax.f32 %v186, %v190
    %v259 = vrot.slane %v258, 4
    %v260 = vmax.f32 %v258, %v259
    %v261 = vrot.slane %v260, 2
    %v262 = vmax.f32 %v260, %v261
    %v263 = vrot.slane %v262, 1
    %v264 = vmax.f32 %v262, %v263
    %v265 = vsub.f32 %v186, %v264
    %v266 = vsub.f32 %v190, %v264
    %v267 = vmul.f32 %v265, 1.442695
    %v268 = vpow.pop %v267
    %v269 = vmul.f32 %v266, 1.442695
    %v270 = vpow.pop %v269
    %v271 = vmul.f32 %v268, %v188
    %v272 = vmul.f32 %v270, %v192
    %v273 = vpack.c.bf16 %v271, %v271
    %v274 = vpack.c.bf16 %v268, %v268
    %v275 = vpack.c.bf16 %v272, %v272
    %v276 = vpack.c.bf16 %v270, %v270
    %v277 = vld [vmem:[#allocation7] sm:$0xff]
    %v278 = vld [vmem:[#allocation7 + $0x8] sm:$0xff]
    %vm279 = vcmask 64512
    %v280 = vsel %vm279, %v277, -inf
    %281 = vmax.xlane.f32.xlu0 %v280
    %v282 = vpop.xlane.xlu0 %281
    %v283 = vsel %vm279, %v278, -inf
    %284 = vmax.xlane.f32.xlu0 %v283
    %v285 = vpop.xlane.xlu0 %284
    %v286 = vsub.f32 %v277, %v282
    %v287 = vsub.f32 %v278, %v285
    %v288 = vmul.f32 %v286, 1.442695
    %v289 = vpow.pop %v288
    %v290 = vmul.f32 %v287, 1.442695
    %v291 = vpow.pop %v290
    %v292 = vpack.c.bf16 %v289, %v289
    %v293 = vpack.c.bf16 %v291, %v291
    %v295 = vsel %vm279, %v292, 0
    %vm297 = vcmask 1043456
    %v299 = vsel %vm297, %v273, 0
    %v302 = vsel %vm297, %v274, 0
    %304 = vmatprep.subr.bf16.mxu0 %v302
    %305 = vmatpush1.bf16.msra.mxu0 %v299
    %306 = vmatprep.subr.bf16.mxu0 0
    %307 = vmatpush1.bf16.msra.mxu0 0
    %308 = vmatprep.subr.bf16.mxu0 0
    %309 = vmatpush1.bf16.msra.mxu0 0
    %310 = vmatprep.subr.bf16.mxu0 0
    %311 = vmatpush1.bf16.msra.mxu0 0
    %312 = vmatprep.subr.bf16.mxu0 0
    %313 = vmatpush1.bf16.msra.mxu0 0
    %314 = vmatprep.subr.bf16.mxu0 0
    %315 = vmatpush1.bf16.msra.mxu0 0
    %316 = vmatprep.subr.bf16.mxu0 0
    %317 = vmatpush1.bf16.msra.mxu0 0
    %318 = vmatprep.subr.bf16.mxu0 0
    %319 = vmatpush1.bf16.msra.mxu0 0
    %320 = vmatprep.subr.bf16.mxu0 0
    %321 = vmatpush1.bf16.msra.mxu0 0
    %322 = vmatprep.subr.bf16.mxu0 0
    %323 = vmatpush1.bf16.msra.mxu0 0
    %324 = vmatprep.subr.bf16.mxu0 0
    %325 = vmatpush1.bf16.msra.mxu0 0
    %326 = vmatprep.subr.bf16.mxu0 0
    %327 = vmatpush1.bf16.msra.mxu0 0
    %328 = vmatprep.subr.bf16.mxu0 0
    %329 = vmatpush1.bf16.msra.mxu0 0
    %330 = vmatprep.subr.bf16.mxu0 0
    %331 = vmatpush1.bf16.msra.mxu0 0
    %332 = vmatprep.subr.bf16.mxu0 0
    %333 = vmatpush1.bf16.msra.mxu0 0
    %334 = vmatprep.subr.bf16.mxu0 0
    %335 = vmatpush1.bf16.msra.mxu0 0
    %336 = vmatprep.mubr.bf16.mxu0 0
    %337 = vmatmul.mubr.bf16.gmra.mrb[0].mxu0 %v295
    %v338 = vpop.f32.mrb[0].mxu0
    %v339 = vadd.f32 0.0, %v338
    %v340 = vpop.f32.mrb[0].mxu0
    %v341 = vadd.f32 0.0, %v340
    %v342 = vpop.f32.mrb[0].mxu0
    %v343 = vpop.f32.mrb[0].mxu0
    %344 = vdwg.mxu0
    %v346 = vsel %vm279, %v293, 0
    %v349 = vsel %vm297, %v275, 0
    %v352 = vsel %vm297, %v276, 0
    %354 = vmatprep.subr.bf16.mxu0 %v352
    %355 = vmatpush1.bf16.msra.mxu0 %v349
    %356 = vmatprep.subr.bf16.mxu0 0
    %357 = vmatpush1.bf16.msra.mxu0 0
    %358 = vmatprep.subr.bf16.mxu0 0
    %359 = vmatpush1.bf16.msra.mxu0 0
    %360 = vmatprep.subr.bf16.mxu0 0
    %361 = vmatpush1.bf16.msra.mxu0 0
    %362 = vmatprep.subr.bf16.mxu0 0
    %363 = vmatpush1.bf16.msra.mxu0 0
    %364 = vmatprep.subr.bf16.mxu0 0
    %365 = vmatpush1.bf16.msra.mxu0 0
    %366 = vmatprep.subr.bf16.mxu0 0
    %367 = vmatpush1.bf16.msra.mxu0 0
    %368 = vmatprep.subr.bf16.mxu0 0
    %369 = vmatpush1.bf16.msra.mxu0 0
    %370 = vmatprep.subr.bf16.mxu0 0
    %371 = vmatpush1.bf16.msra.mxu0 0
    %372 = vmatprep.subr.bf16.mxu0 0
    %373 = vmatpush1.bf16.msra.mxu0 0
    %374 = vmatprep.subr.bf16.mxu0 0
    %375 = vmatpush1.bf16.msra.mxu0 0
    %376 = vmatprep.subr.bf16.mxu0 0
    %377 = vmatpush1.bf16.msra.mxu0 0
    %378 = vmatprep.subr.bf16.mxu0 0
    %379 = vmatpush1.bf16.msra.mxu0 0
    %380 = vmatprep.subr.bf16.mxu0 0
    %381 = vmatpush1.bf16.msra.mxu0 0
    %382 = vmatprep.subr.bf16.mxu0 0
    %383 = vmatpush1.bf16.msra.mxu0 0
    %384 = vmatprep.subr.bf16.mxu0 0
    %385 = vmatpush1.bf16.msra.mxu0 0
    %386 = vmatprep.mubr.bf16.mxu0 0
    %387 = vmatmul.mubr.bf16.gmra.mrb[0].mxu0 %v346
    %v388 = vpop.f32.mrb[0].mxu0
    %v389 = vadd.f32 0.0, %v388
    %v390 = vpop.f32.mrb[0].mxu0
    %v391 = vadd.f32 0.0, %v390
    %v392 = vpop.f32.mrb[0].mxu0
    %v393 = vpop.f32.mrb[0].mxu0
    %394 = vdwg.mxu0
    %v395 = vrcp.pop %v341
    %v396 = vrcp.pop %v391
    %v397 = vmul.f32 %v339, %v395
    %v398 = vmul.f32 %v389, %v396
    %v399 = vxor.u32 %v252, 2147483648
    %v400 = vxor.u32 %v255, 2147483648
    %v401 = vmul.f32 %v399, 1.442695
    %v402 = vpow.pop %v401
    %v403 = vmul.f32 %v400, 1.442695
    %v404 = vpow.pop %v403
    %v405 = vadd.f32 %v402, 1.0
    %v406 = vadd.f32 %v404, 1.0
    %v407 = vrcp.pop %v405
    %v408 = vmul.f32 1.0, %v407
    %v409 = vrcp.pop %v406
    %v410 = vmul.f32 1.0, %v409
    %v411 = vmul.f32 %v408, %v397
    %v412 = vmul.f32 %v410, %v398
    %v413 = vpack.c.bf16 %v411, %v411
    %v414 = vpack.c.bf16 %v412, %v412
    %v415 = vld [vmem:[#allocation11] sm:$0xf]
    %v416 = vld [vmem:[#allocation11 + $0x4] sm:$0xf]
    %v417 = vld [vmem:[#allocation11 + $0x8] sm:$0xf]
    %v418 = vld [vmem:[#allocation11 + $0xc] sm:$0xf]
    %v419 = vld [vmem:[#allocation11 + $0x10] sm:$0xf]
    %v420 = vld [vmem:[#allocation11 + $0x14] sm:$0xf]
    %v421 = vld [vmem:[#allocation11 + $0x18] sm:$0xf]
    %v422 = vld [vmem:[#allocation11 + $0x1c] sm:$0xf]
    %v423 = vld [vmem:[#allocation11 + $0x20] sm:$0xf]
    %v424 = vld [vmem:[#allocation11 + $0x24] sm:$0xf]
    %v425 = vld [vmem:[#allocation11 + $0x28] sm:$0xf]
    %v426 = vld [vmem:[#allocation11 + $0x2c] sm:$0xf]
    %v427 = vld [vmem:[#allocation11 + $0x30] sm:$0xf]
    %v428 = vld [vmem:[#allocation11 + $0x34] sm:$0xf]
    %v429 = vld [vmem:[#allocation11 + $0x38] sm:$0xf]
    %v430 = vld [vmem:[#allocation11 + $0x3c] sm:$0xf]
    %v431 = vld [vmem:[%s8] sm:$0x1]
    %v433 = vlaneseq
    %v434 = vshrl.u32 %v433, 7
    %v435 = vsub.s32 0, %v434
    %v436 = vrot.slane %v431, %v435
    %v440 = vunpack.c.l.b16 %v413
    %v441 = vunpack.c.l.b16 %v414
    %v442 = vpack.c.b16 %v441, %v440
    %v460 = vunpack.c.l.b16 %v415
    %v461 = vunpack.c.l.b16 %v416
    %v462 = vunpack.c.l.b16 %v417
    %v463 = vunpack.c.l.b16 %v418
    %v464 = vunpack.c.l.b16 %v419
    %v465 = vunpack.c.l.b16 %v420
    %v466 = vunpack.c.l.b16 %v421
    %v467 = vunpack.c.l.b16 %v422
    %v468 = vunpack.c.l.b16 %v423
    %v469 = vunpack.c.l.b16 %v424
    %v470 = vunpack.c.l.b16 %v425
    %v471 = vunpack.c.l.b16 %v426
    %v472 = vunpack.c.l.b16 %v427
    %v473 = vunpack.c.l.b16 %v428
    %v474 = vunpack.c.l.b16 %v429
    %v475 = vunpack.c.l.b16 %v430
    %v476 = vpack.c.b16 %v461, %v460
    %v477 = vpack.c.b16 %v463, %v462
    %v478 = vpack.c.b16 %v465, %v464
    %v479 = vpack.c.b16 %v467, %v466
    %v480 = vpack.c.b16 %v469, %v468
    %v481 = vpack.c.b16 %v471, %v470
    %v482 = vpack.c.b16 %v473, %v472
    %v483 = vpack.c.b16 %v475, %v474
    %492 = vmatprep.subr.bf16.mxu0 0
    %493 = vmatpush1.bf16.msra.mxu0 %v476
    %494 = vmatprep.subr.bf16.mxu0 0
    %495 = vmatpush1.bf16.msra.mxu0 %v477
    %496 = vmatprep.subr.bf16.mxu0 0
    %497 = vmatpush1.bf16.msra.mxu0 %v478
    %498 = vmatprep.subr.bf16.mxu0 0
    %499 = vmatpush1.bf16.msra.mxu0 %v479
    %500 = vmatprep.subr.bf16.mxu0 0
    %501 = vmatpush1.bf16.msra.mxu0 %v480
    %502 = vmatprep.subr.bf16.mxu0 0
    %503 = vmatpush1.bf16.msra.mxu0 %v481
    %504 = vmatprep.subr.bf16.mxu0 0
    %505 = vmatpush1.bf16.msra.mxu0 %v482
    %506 = vmatprep.subr.bf16.mxu0 0
    %507 = vmatpush1.bf16.msra.mxu0 %v483
    %508 = vmatprep.subr.bf16.mxu0 0
    %509 = vmatpush1.bf16.msra.mxu0 0
    %510 = vmatprep.subr.bf16.mxu0 0
    %511 = vmatpush1.bf16.msra.mxu0 0
    %512 = vmatprep.subr.bf16.mxu0 0
    %513 = vmatpush1.bf16.msra.mxu0 0
    %514 = vmatprep.subr.bf16.mxu0 0
    %515 = vmatpush1.bf16.msra.mxu0 0
    %516 = vmatprep.subr.bf16.mxu0 0
    %517 = vmatpush1.bf16.msra.mxu0 0
    %518 = vmatprep.subr.bf16.mxu0 0
    %519 = vmatpush1.bf16.msra.mxu0 0
    %520 = vmatprep.subr.bf16.mxu0 0
    %521 = vmatpush1.bf16.msra.mxu0 0
    %522 = vmatprep.subr.bf16.mxu0 0
    %523 = vmatpush1.bf16.msra.mxu0 0
    %524 = vmatprep.mubr.bf16.mxu0 0
    %525 = vmatmul.mubr.bf16.gmra.mrb[0].mxu0 %v442
    %v526 = vpop.f32.mrb[0].mxu0
    %v527 = vadd.f32 %v436, %v526
    %v528 = vpop.f32.mrb[0].mxu0
    %v529 = vpop.f32.mrb[0].mxu0
    %v530 = vadd.f32 %v436, %v529
    %v531 = vpop.f32.mrb[0].mxu0
    %532 = vdwg.mxu0
    %533 = vst [vmem:[#allocation13] sm:$0xff] %v527
    %534 = vst [vmem:[#allocation13 + $0x8] sm:$0xff] %v530
    // Predicated region
    $region62: #{tpu_custom_call.1} parent=1 // pred_check
      _
    $region63: #{tpu_custom_call.1} parent=1 // pred_check_branch
      %536 = sbr.rel (0) target = $region65
    $region64: #{tpu_custom_call.1} parent=1 // pred_region
      %s538 = ssub.s32 256, 256
      %539 = vsyncadd [#allocation4], %s538
      %s540 = sshll.u32 [#allocation13], 4
      %s541 = int_to_ptr.vmem [resolvable:$true] %s540
      %546 = dma.vmem_to_hbm [thread:$0]  %s541, 256, %s9, [#allocation4], 128, 128, 8
    $region65: #{tpu_custom_call.1} parent=1 // pred_fallthru
      _
    // Predicated region
    $region66: #{tpu_custom_call.1} parent=1 // pred_check
      _
    $region67: #{tpu_custom_call.1} parent=1 // pred_check_branch
      %548 = sbr.rel (0) target = $region69
    $region68: #{tpu_custom_call.1} parent=1 // pred_region
      %549 = dma.done [#allocation4], 256
    $region69: #{tpu_custom_call.1} parent=1 // pred_fallthru
      _
    %550 = vsyncpa [#allocation3], 1
    %551 = vsyncpa [#allocation6], 1
    %552 = vsyncpa [#allocation9], 1
    %553 = vsyncpa [#allocation12], 1
    %554 = vsyncpa [#allocation4], 1

</llo_original>
